<compile_context>
chip_gen: v6e
topology: v6e:2x2x1
jax: 0.10.0
libtpu: 0.0.40
codegen_flags: <defaults>
</compile_context>

<pallas_src>
import jax
import jax.numpy as jnp
from jax import lax
from jax.experimental import pallas as pl
from jax.experimental.pallas import tpu as pltpu


def _round_up(x, m):
    return (x + m - 1) // m * m


def ranker_head_kernel(x_ref, w1_ref, b1_ref, w2_ref, b2_ref, o_ref):
    # x_ref : (TM, D) bf16   CLS-token features, one row per (batch, candidate)
    # w1_ref: (D, D)  bf16   dense weight, PyTorch (out, in) layout
    # b1_ref: (1, D)  f32    dense bias
    # w2_ref: (1, D)  f32    out_proj weight row
    # b2_ref: (1, 1)  f32    out_proj bias
    # o_ref : (TM, 1) f32    scores
    x = x_ref[...]
    # h = x @ W1^T : contract the last dims of both operands directly
    # (no transpose copy), bf16 operands on the MXU, f32 accumulation.
    h = lax.dot_general(
        x, w1_ref[...],
        dimension_numbers=(((1,), (1,)), ((), ())),
        preferred_element_type=jnp.float32,
    )
    h = jnp.tanh(h + b1_ref[...])           # f32 bias add + f32 tanh (EUP)
    # Dropout is identity in eval/inference mode -> no-op.
    # out_proj has a single output column: VPU multiply + lane reduce.
    s = jnp.sum(h * w2_ref[...], axis=-1, keepdims=True) + b2_ref[...]
    o_ref[...] = s.astype(o_ref.dtype)


def bart_ranker_head(features, w_dense, b_dense, w_out, b_out, *, tm=256):
    """features: (B, C, L, D). w_dense: (D, D) (out,in). w_out: (1, D).

    Returns scores of shape (B, C, 1), matching BartRankerHead.forward in eval
    mode (dropout = identity).
    """
    B, C, L, D = features.shape
    M = B * C

    # CLS-token slice, flatten to a 2-D (M, D) slab, and cast the MXU operand
    # to bf16 (XLA fuses the cast into the gather; accumulation stays f32).
    x = features[:, :, 0, :].reshape(M, D).astype(jnp.bfloat16)
    # TODO(synk): in a real model, store w_dense in bf16 outside the hot path
    # so this per-call cast disappears.
    w1 = w_dense.astype(jnp.bfloat16)                  # (D, D), (out, in) layout
    b1 = b_dense.reshape(1, D).astype(jnp.float32)
    w2 = w_out.reshape(1, D).astype(jnp.float32)
    b2 = b_out.reshape(1, 1).astype(jnp.float32)

    # Sublane-aligned row tile; Pallas masks the ragged edge block if tm ∤ M.
    tm = min(tm, _round_up(M, 8))
    grid = (pl.cdiv(M, tm),)

    # Rough VMEM budget: double-buffered x/out tiles + resident W1 + vectors.
    vmem_bytes = (2 * tm * D * 2          # x double buffer (bf16)
                  + 2 * D * D * 2         # W1 (bf16)
                  + 2 * (2 * D + 1) * 4   # b1, w2, b2 (f32)
                  + 2 * tm * 4)           # out double buffer (f32)
    vmem_limit = int(min(48 * 1024 * 1024,
                         max(2 * vmem_bytes, 16 * 1024 * 1024)))

    cost = pl.CostEstimate(
        flops=2 * M * D * D + 4 * M * D,
        transcendentals=M * D,
        bytes_accessed=M * D * 2 + D * D * 2 + (2 * D + 1) * 4 + M * 4,
    )

    out = pl.pallas_call(
        ranker_head_kernel,
        out_shape=jax.ShapeDtypeStruct((M, 1), jnp.float32),
        grid=grid,
        in_specs=[
            pl.BlockSpec((tm, D), lambda i: (i, 0)),   # x tiles stream in
            pl.BlockSpec((D, D), lambda i: (0, 0)),    # W1 stays VMEM-resident
            pl.BlockSpec((1, D), lambda i: (0, 0)),
            pl.BlockSpec((1, D), lambda i: (0, 0)),
            pl.BlockSpec((1, 1), lambda i: (0, 0)),
        ],
        out_specs=pl.BlockSpec((tm, 1), lambda i: (i, 0)),
        compiler_params=pltpu.CompilerParams(
            dimension_semantics=("parallel",),
            vmem_limit_bytes=vmem_limit,
        ),
        cost_estimate=cost,
    )(x, w1, b1, w2, b2)

    return out.reshape(B, C, 1).astype(features.dtype)


if __name__ == "__main__":
    # Small shapes consistent with the module's forward.
    B, C, L, D = 2, 4, 8, 32  # batch, candidates, seq len, hidden size

    key = jax.random.PRNGKey(0)
    k_feat, k_w1, k_b1, k_w2, k_b2 = jax.random.split(key, 5)

    features = jax.random.normal(k_feat, (B, C, L, D), dtype=jnp.float32)

    # Deterministic synthetic parameters (PyTorch-like uniform init scale).
    bound1 = 1.0 / (D ** 0.5)
    w_dense = jax.random.uniform(k_w1, (D, D), jnp.float32, -bound1, bound1)
    b_dense = jax.random.uniform(k_b1, (D,), jnp.float32, -bound1, bound1)
    w_out = jax.random.uniform(k_w2, (1, D), jnp.float32, -bound1, bound1)
    b_out = jax.random.uniform(k_b2, (1,), jnp.float32, -bound1, bound1)

    out = bart_ranker_head(features, w_dense, b_dense, w_out, b_out)
    out = jax.block_until_ready(out)

    # Pure-JAX references.
    x_f32 = features[:, :, 0, :]
    ref_f32 = jnp.tanh(x_f32 @ w_dense.T + b_dense) @ w_out.T + b_out
    # Same math with the kernel's bf16 MXU operands (tighter check).
    x_bf = x_f32.astype(jnp.bfloat16).astype(jnp.float32)
    w_bf = w_dense.astype(jnp.bfloat16).astype(jnp.float32)
    ref_bf = jnp.tanh(x_bf @ w_bf.T + b_dense) @ w_out.T + b_out

    assert out.shape == (B, C, 1)
    assert jnp.allclose(out, ref_bf, atol=1e-3, rtol=1e-3), \
        float(jnp.max(jnp.abs(out - ref_bf)))
    assert jnp.allclose(out, ref_f32, atol=2e-2, rtol=2e-2), \
        float(jnp.max(jnp.abs(out - ref_f32)))

    print("KERNEL_OK")
</pallas_src>

<mosaic_0001>
module attributes {stable_mosaic.version = 11 : i64} {
  func.func @ranker_head_kernel(%arg0: i32, %arg1: memref<8x32xbf16, #tpu.memory_space<vmem>>, %arg2: memref<32x32xbf16, #tpu.memory_space<vmem>>, %arg3: memref<1x32xf32, #tpu.memory_space<vmem>>, %arg4: memref<1x32xf32, #tpu.memory_space<vmem>>, %arg5: memref<1x1xf32, #tpu.memory_space<vmem>>, %arg6: memref<8x1xf32, #tpu.memory_space<vmem>>) attributes {dimension_semantics = [#tpu.dimension_semantics<parallel>], iteration_bounds = array<i64: 1>, scalar_prefetch = 0 : i64, scratch_operands = 0 : i64, tpu.core_type = #tpu.core_type<tc>, window_params = [{transform_indices = @transform_0, window_bounds = array<i64: 8, 32>}, {pipeline_mode = #tpu.pipeline_mode<synchronous>, transform_indices = @transform_1, window_bounds = array<i64: 32, 32>}, {pipeline_mode = #tpu.pipeline_mode<synchronous>, transform_indices = @transform_2, window_bounds = array<i64: 1, 32>}, {pipeline_mode = #tpu.pipeline_mode<synchronous>, transform_indices = @transform_3, window_bounds = array<i64: 1, 32>}, {pipeline_mode = #tpu.pipeline_mode<synchronous>, transform_indices = @transform_4, window_bounds = array<i64: 1, 1>}, {transform_indices = @transform_5, window_bounds = array<i64: 8, 1>}]} {
    %c0 = arith.constant 0 : index
    %c0_0 = arith.constant 0 : index
    %0 = vector.load %arg1[%c0, %c0_0] : memref<8x32xbf16, #tpu.memory_space<vmem>>, vector<8x32xbf16>
    %c0_1 = arith.constant 0 : index
    %c0_2 = arith.constant 0 : index
    %1 = vector.load %arg2[%c0_1, %c0_2] : memref<32x32xbf16, #tpu.memory_space<vmem>>, vector<32x32xbf16>
    %cst = arith.constant dense<0.000000e+00> : vector<8x32xf32>
    %2 = tpu.matmul %0, %1, %cst {dimension_numbers = #tpu.dot_dimension_numbers<[1], [1], [0], [0], [0, 0, 1, 0], [], []>} : vector<8x32xbf16>, vector<32x32xbf16>, vector<8x32xf32> -> vector<8x32xf32>
    %c0_3 = arith.constant 0 : index
    %c0_4 = arith.constant 0 : index
    %3 = vector.load %arg3[%c0_3, %c0_4] : memref<1x32xf32, #tpu.memory_space<vmem>>, vector<1x32xf32>
    %4 = vector.broadcast %3 : vector<1x32xf32> to vector<8x32xf32>
    %5 = arith.addf %2, %4 : vector<8x32xf32>
    %6 = math.tanh %5 : vector<8x32xf32>
    %c0_5 = arith.constant 0 : index
    %c0_6 = arith.constant 0 : index
    %7 = vector.load %arg4[%c0_5, %c0_6] : memref<1x32xf32, #tpu.memory_space<vmem>>, vector<1x32xf32>
    %8 = vector.broadcast %7 : vector<1x32xf32> to vector<8x32xf32>
    %9 = arith.mulf %6, %8 : vector<8x32xf32>
    %cst_7 = arith.constant dense<0.000000e+00> : vector<8xf32>
    %10 = vector.multi_reduction <add>, %9, %cst_7 [1] : vector<8x32xf32> to vector<8xf32>
    %11 = vector.shape_cast %10 : vector<8xf32> to vector<8x1xf32>
    %c0_8 = arith.constant 0 : index
    %c0_9 = arith.constant 0 : index
    %12 = vector.load %arg5[%c0_8, %c0_9] : memref<1x1xf32, #tpu.memory_space<vmem>>, vector<1x1xf32>
    %13 = vector.broadcast %12 : vector<1x1xf32> to vector<8x1xf32>
    %14 = arith.addf %11, %13 : vector<8x1xf32>
    %c0_10 = arith.constant 0 : index
    %c0_11 = arith.constant 0 : index
    %15 = vector.load %arg6[%c0_10, %c0_11] : memref<8x1xf32, #tpu.memory_space<vmem>>, vector<8x1xf32>
    tpu.vector_store %arg6[%c0_10, %c0_11], %14 {strides = array<i32>} : memref<8x1xf32, #tpu.memory_space<vmem>>, vector<8x1xf32>,
    return
  }
  func.func @transform_0(%arg0: i32) -> (i32, i32) {
    %c0_i32 = arith.constant 0 : i32
    %c0_i32_0 = arith.constant 0 : i32
    return %arg0, %c0_i32 : i32, i32
  }
  func.func @transform_1(%arg0: i32) -> (i32, i32) {
    %c0_i32 = arith.constant 0 : i32
    %c0_i32_0 = arith.constant 0 : i32
    %c0_i32_1 = arith.constant 0 : i32
    return %c0_i32, %c0_i32_0 : i32, i32
  }
  func.func @transform_2(%arg0: i32) -> (i32, i32) {
    %c0_i32 = arith.constant 0 : i32
    %c0_i32_0 = arith.constant 0 : i32
    %c0_i32_1 = arith.constant 0 : i32
    return %c0_i32, %c0_i32_0 : i32, i32
  }
  func.func @transform_3(%arg0: i32) -> (i32, i32) {
    %c0_i32 = arith.constant 0 : i32
    %c0_i32_0 = arith.constant 0 : i32
    %c0_i32_1 = arith.constant 0 : i32
    return %c0_i32, %c0_i32_0 : i32, i32
  }
  func.func @transform_4(%arg0: i32) -> (i32, i32) {
    %c0_i32 = arith.constant 0 : i32
    %c0_i32_0 = arith.constant 0 : i32
    %c0_i32_1 = arith.constant 0 : i32
    return %c0_i32, %c0_i32_0 : i32, i32
  }
  func.func @transform_5(%arg0: i32) -> (i32, i32) {
    %c0_i32 = arith.constant 0 : i32
    %c0_i32_0 = arith.constant 0 : i32
    return %arg0, %c0_i32 : i32, i32
  }
}

</mosaic_0001>

<llo_original>
// kernel: tpu_custom_call.1
$region0: #{tpu_custom_call.1}
  #allocation0 [shape = 'u32[]', space=smem, size = 0x4, offset = 0x4, fixed_abs, tag = 'smem constant byte address 0x4 - core index']
  #allocation1 [shape = 'u32[144,128]{1,0:T(1,128)}', space=vmem, size = 0x12000, scoped, tag = 'internal scratch']
  #allocation2 [shape = 'f32[1,1]{1,0:T(1,128)S(1)}', space=vmem, size = 0x200, scoped, tag = 'scoped memory for tpu_custom_call.1']
  %s0 = inlined_call_operand.hbm [shape: bf16[8,32], index: 0, kind: input, shape index: {}]
  %s1 = inlined_call_operand.hbm [shape: bf16[32,32], index: 1, kind: input, shape index: {}]
  %s2 = inlined_call_operand.vmem [shape: f32[1,32], index: 2, kind: input, shape index: {}]
  %s3 = inlined_call_operand.vmem [shape: f32[1,32], index: 3, kind: input, shape index: {}]
  %s4 = inlined_call_operand.<no memory space> [shape: f32[1,1], index: 4, kind: input, shape index: {}]
  %s5 = inlined_call_operand.vmem [shape: f32[8,1], index: 5, kind: output, shape index: {}]
  %s6 = sld [smem:[#allocation0]]
  $region38: #{tpu_custom_call.1} parent=0
    _
  %s8 = ssub.s32 1, %s6
  %s9 = scalar_select 0, %s8, %s6
  %v10 = vstv %s4
  %11 = vst [vmem:[#allocation2] sm:$0x1] %v10
  $region1: #{tpu_custom_call.1} parent=0
    #allocation3 [shape = 'u8[2048]{0}', space=vmem, size = 0x800, scoped, tag = 'input window, operand 0, single buffered']
    #allocation4 [shape = 's32[1]{0}', space=sflag, size = 0x4, scoped, tag = 'scoped memory for tpu_custom_call.1']
    #allocation5 [shape = 'u8[8192]{0}', space=vmem, size = 0x2000, scoped, tag = 'input window, operand 1, single buffered']
    #allocation6 [shape = 's32[1]{0}', space=sflag, size = 0x4, scoped, tag = 'scoped memory for tpu_custom_call.1']
    %12 = vsyncpa [#allocation4], 0
    %13 = vsyncpa [#allocation6], 0
    // Predicated region
    $region2: #{tpu_custom_call.1} parent=1 // pred_check
      _
    $region3: #{tpu_custom_call.1} parent=1 // pred_check_branch
      %15 = sbr.rel (0) target = $region5
    $region4: #{tpu_custom_call.1} parent=1 // pred_region
      %s17 = ssub.s32 64, 64
      %18 = vsyncadd [#allocation4], %s17
      %s20 = sshll.u32 [#allocation3], 4
      %s21 = int_to_ptr.vmem [resolvable:$true] %s20
      %23 = dma.hbm_to_vmem [thread:$0]  %s0, 64, %s21, [#allocation4]
    $region5: #{tpu_custom_call.1} parent=1 // pred_fallthru
      _
    // Predicated region
    $region6: #{tpu_custom_call.1} parent=1 // pred_check
      _
    $region7: #{tpu_custom_call.1} parent=1 // pred_check_branch
      %25 = sbr.rel (0) target = $region9
    $region8: #{tpu_custom_call.1} parent=1 // pred_region
      %s27 = ssub.s32 256, 256
      %28 = vsyncadd [#allocation6], %s27
      %s29 = sshll.u32 [#allocation5], 4
      %s30 = int_to_ptr.vmem [resolvable:$true] %s29
      %35 = dma.hbm_to_vmem [thread:$0]  %s1, 256, %s30, [#allocation6], 64, 64, 4
    $region9: #{tpu_custom_call.1} parent=1 // pred_fallthru
      _
    // Predicated region
    $region10: #{tpu_custom_call.1} parent=1 // pred_check
      _
    $region11: #{tpu_custom_call.1} parent=1 // pred_check_branch
      %37 = sbr.rel (0) target = $region13
    $region12: #{tpu_custom_call.1} parent=1 // pred_region
      _
    $region13: #{tpu_custom_call.1} parent=1 // pred_fallthru
      _
    // Predicated region
    $region14: #{tpu_custom_call.1} parent=1 // pred_check
      _
    $region15: #{tpu_custom_call.1} parent=1 // pred_check_branch
      %39 = sbr.rel (0) target = $region17
    $region16: #{tpu_custom_call.1} parent=1 // pred_region
      _
    $region17: #{tpu_custom_call.1} parent=1 // pred_fallthru
      _
    // Predicated region
    $region18: #{tpu_custom_call.1} parent=1 // pred_check
      _
    $region19: #{tpu_custom_call.1} parent=1 // pred_check_branch
      %41 = sbr.rel (0) target = $region21
    $region20: #{tpu_custom_call.1} parent=1 // pred_region
      _
    $region21: #{tpu_custom_call.1} parent=1 // pred_fallthru
      _
    // Predicated region
    $region22: #{tpu_custom_call.1} parent=1 // pred_check
      _
    $region23: #{tpu_custom_call.1} parent=1 // pred_check_branch
      %43 = sbr.rel (0) target = $region25
    $region24: #{tpu_custom_call.1} parent=1 // pred_region
      %44 = dma.done [#allocation4], 64
    $region25: #{tpu_custom_call.1} parent=1 // pred_fallthru
      _
    // Predicated region
    $region26: #{tpu_custom_call.1} parent=1 // pred_check
      _
    $region27: #{tpu_custom_call.1} parent=1 // pred_check_branch
      %46 = sbr.rel (0) target = $region29
    $region28: #{tpu_custom_call.1} parent=1 // pred_region
      %47 = dma.done [#allocation6], 256
    $region29: #{tpu_custom_call.1} parent=1 // pred_fallthru
      _
    %v49 = vld [vmem:[#allocation3] sm:$0xf]
    %v50 = vld [vmem:[#allocation5] sm:$0xf]
    %v51 = vld [vmem:[#allocation5 + $0x4] sm:$0xf]
    %v52 = vld [vmem:[#allocation5 + $0x8] sm:$0xf]
    %v53 = vld [vmem:[#allocation5 + $0xc] sm:$0xf]
    %v54 = vld [vmem:[%s2] sm:$0x1]
    %v56 = vlaneseq
    %v57 = vshrl.u32 %v56, 7
    %v58 = vsub.s32 0, %v57
    %v59 = vrot.slane %v54, %v58
    %v65 = vunpack.c.l.b16 %v50
    %v66 = vunpack.c.l.b16 %v51
    %v67 = vunpack.c.l.b16 %v52
    %v68 = vunpack.c.l.b16 %v53
    %v69 = vpack.c.b16 %v66, %v65
    %v70 = vpack.c.b16 %v68, %v67
    %vm71 = vcmask 261120
    %v73 = vsel %vm71, %v49, 0
    %v76 = vsel %vm71, %v69, 0
    %v79 = vsel %vm71, %v70, 0
    %81 = vmatprep.subr.bf16.mxu0 0
    %82 = vmatpush1.bf16.xpose.msra.mxu0 0
    %83 = vmatprep.subr.bf16.mxu0 0
    %84 = vmatpush1.bf16.xpose.msra.mxu0 0
    %85 = vmatprep.subr.bf16.mxu0 0
    %86 = vmatpush1.bf16.xpose.msra.mxu0 0
    %87 = vmatprep.subr.bf16.mxu0 0
    %88 = vmatpush1.bf16.xpose.msra.mxu0 0
    %89 = vmatprep.subr.bf16.mxu0 0
    %90 = vmatpush1.bf16.xpose.msra.mxu0 0
    %91 = vmatprep.subr.bf16.mxu0 0
    %92 = vmatpush1.bf16.xpose.msra.mxu0 0
    %93 = vmatprep.subr.bf16.mxu0 0
    %94 = vmatpush1.bf16.xpose.msra.mxu0 %v79
    %95 = vmatprep.subr.bf16.mxu0 0
    %96 = vmatpush1.bf16.xpose.msra.mxu0 %v76
    %97 = vmatprep.subr.bf16.mxu0 0
    %98 = vmatpush2.bf16.xpose.msra.mxu0 0
    %99 = vmatprep.subr.bf16.mxu0 0
    %100 = vmatpush2.bf16.xpose.msra.mxu0 0
    %101 = vmatprep.subr.bf16.mxu0 0
    %102 = vmatpush2.bf16.xpose.msra.mxu0 0
    %103 = vmatprep.subr.bf16.mxu0 0
    %104 = vmatpush2.bf16.xpose.msra.mxu0 0
    %105 = vmatprep.subr.bf16.mxu0 0
    %106 = vmatpush2.bf16.xpose.msra.mxu0 0
    %107 = vmatprep.subr.bf16.mxu0 0
    %108 = vmatpush2.bf16.xpose.msra.mxu0 0
    %109 = vmatprep.subr.bf16.mxu0 0
    %110 = vmatpush2.bf16.xpose.msra.mxu0 0
    %111 = vmatprep.subr.bf16.mxu0 0
    %112 = vmatpush2.bf16.xpose.msra.mxu0 0
    %113 = vmatprep.mubr.bf16.mxu0 0
    %114 = vmatmul.mubr.bf16.gmra.mxu0 %v73
    %v115 = vpop.f32.mrf.mxu0
    %v116 = vadd.f32 %v59, %v115
    %v117 = vpop.f32.mrf.mxu0
    %v118 = vpop.f32.mrf.mxu0
    %v119 = vpop.f32.mrf.mxu0
    %120 = vdwg.mxu0
    %v121 = vtanh.pop %v116
    %v122 = vld [vmem:[%s3] sm:$0x1]
    %v124 = vlaneseq
    %v125 = vshrl.u32 %v124, 7
    %v126 = vsub.s32 0, %v125
    %v127 = vrot.slane %v122, %v126
    %v129 = vmul.f32 %v121, %v127
    %v130 = vsel %vm71, %v129, 0.0
    %131 = vadd.xlane.f32.xlu0 %v130
    %v132 = vpop.xlane.xlu0 %131
    %v133 = vld [vmem:[#allocation2] sm:$0x1]
    %v135 = vlaneseq
    %v136 = vshrl.u32 %v135, 7
    %v137 = vsub.s32 0, %v136
    %v138 = vrot.slane %v133, %v137
    %v140 = vadd.f32 %v132, %v138
    %vm141 = vcmask 7168
    %142 = vst.msk [vmem:[%s5] sm:$0xff] %vm141, %v140
    // Predicated region
    $region30: #{tpu_custom_call.1} parent=1 // pred_check
      _
    $region31: #{tpu_custom_call.1} parent=1 // pred_check_branch
      %144 = sbr.rel (0) target = $region33
    $region32: #{tpu_custom_call.1} parent=1 // pred_region
      _
    $region33: #{tpu_custom_call.1} parent=1 // pred_fallthru
      _
    // Predicated region
    $region34: #{tpu_custom_call.1} parent=1 // pred_check
      _
    $region35: #{tpu_custom_call.1} parent=1 // pred_check_branch
      %146 = sbr.rel (0) target = $region37
    $region36: #{tpu_custom_call.1} parent=1 // pred_region
      _
    $region37: #{tpu_custom_call.1} parent=1 // pred_fallthru
      _
    %147 = vsyncpa [#allocation4], 1
    %148 = vsyncpa [#allocation6], 1

</llo_original>
